<compile_context>
chip_gen: v7x
topology: tpu7x:2x2x1
jax: 0.10.0
libtpu: 0.0.40
codegen_flags: <defaults>
</compile_context>

<pallas_src>
import jax
import jax.numpy as jnp
import numpy as np
from jax import lax
from jax.experimental import pallas as pl
from jax.experimental.pallas import tpu as pltpu


# --------------------------------------------------------------------------- #
# Kernel
# --------------------------------------------------------------------------- #
def _make_l_sat_kernel(t, lane, acc_rows):
    """One grid step reduces a (b, c, t, lane) tile into a (acc_rows, lane) acc."""

    def kernel(x_ref, o_ref, acc_ref):
        i = pl.program_id(1)  # inner ("arbitrary") reduction axis

        @pl.when(i == 0)
        def _():
            acc_ref[...] = jnp.zeros_like(acc_ref)

        x = x_ref[...]                                   # (b, c, t, lane)
        if x.dtype != jnp.float32:                       # no-op for f32 inputs
            x = x.astype(jnp.float32)

        mean_c = jnp.mean(x, axis=1, keepdims=True)      # (b, 1, t, lane)
        sat = jnp.abs(x - mean_c)                        # (b, c, t, lane)
        part = jnp.sum(sat, axis=(0, 1))                 # (t, lane) - VPU adds only

        if acc_rows != t:
            # Fold sublane groups of 8: stays on the VPU (vreg-to-vreg adds),
            # keeps the accumulator read-modify-write traffic at (8, lane).
            part = part.reshape(t // acc_rows, acc_rows, lane).sum(axis=0)

        acc_ref[...] += part

        @pl.when(i == pl.num_programs(1) - 1)
        def _():
            # Single cross-lane (XLU) reduce, once per output partial.
            o_ref[...] = jnp.sum(acc_ref[...]).reshape(1, 1)

    return kernel


# --------------------------------------------------------------------------- #
# Tiling helpers
# --------------------------------------------------------------------------- #
def _pick_tile(s_valid, s_total, min_sub, bytes_per_row, acc_bytes, budget):
    """Largest tile t dividing s_valid, aligned to the dtype's sublane tile,
    whose double-buffered footprint fits `budget`."""
    for sub in sorted({min_sub, 8}, reverse=True):
        best = 0
        t = sub
        while t <= s_valid:
            if s_valid % t == 0 and 2 * t * bytes_per_row + acc_bytes <= budget:
                best = t
            t += sub
        if best:
            return best
        if s_valid % sub == 0:
            return sub                    # nothing fits the budget; smallest legal tile
    # No 8-aligned divisor exists.  The caller only reaches this case when
    # s_valid == s_total, so a full-extent block is legal (may be large for
    # huge odd-sized images; proper fix would be padding/masking).
    return s_valid


def _detect_num_tensorcores():
    """Best-effort TensorCore count of the local device (v7x has 2 per chip).
    Returning 1 is always safe (pure sequential grid)."""
    try:
        dev = jax.devices()[0]
        for attr in ("num_cores", "core_count"):
            v = getattr(dev, attr, None)
            if isinstance(v, int) and 1 <= v <= 8:
                return v
    except Exception:
        pass
    return 1


# --------------------------------------------------------------------------- #
# Wrapper
# --------------------------------------------------------------------------- #
def l_sat_pallas(x, div, *, n_parallel=None, tile=None,
                 per_buffer_budget_bytes=12 << 20):
    """x: (b, c, h, w) float array.  Returns shape-(1,) float32 == L_SAT(x)."""
    b, c, h, w = x.shape
    blockH, blockW = h // div, w // div
    assert blockH > 0 and blockW > 0, "div larger than spatial size"
    hc, wc = blockH * div, blockW * div
    norm = float(b * c * hc * wc)

    itemsize = int(x.dtype.itemsize)
    # Minimum sublane tile: (8,128) f32, (16,128) bf16, (32,128) int8/fp8.
    min_sub = max(8, 32 // itemsize)

    # ---- layout selection --------------------------------------------------
    if wc != w:
        # Column crop is strided in memory -> pay one copy (rare case).
        # TODO(synk): avoid with in-kernel column masking (broadcasted_iota < wc).
        x = lax.slice(x, (0, 0, 0, 0), (b, c, hc, wc))
        h, w = hc, wc

    n_total, n_valid = h * w, hc * w
    if (n_total % 128 == 0 and n_valid % 128 == 0
            and (hc == h or (n_valid // 128) % min_sub == 0)):
        # Lane-dense: flatten the spatial dims -> (b, c, S, 128).  Free
        # (contiguous) reshape; full vreg/VMEM utilisation even when w < 128.
        lane = 128
        s_total, s_valid = n_total // 128, n_valid // 128
        xr = x.reshape(b, c, s_total, lane)
    elif hc == h or hc % min_sub == 0:
        # Row layout, no copy: the grid simply never touches rows >= hc.
        lane, s_total, s_valid = w, h, hc
        xr = x
    else:
        # Awkward extents: crop rows once so a full-extent block is legal.
        x = lax.slice(x, (0, 0, 0, 0), (b, c, hc, w))
        if (hc * w) % 128 == 0:
            lane = 128
            s_total = s_valid = (hc * w) // 128
            xr = x.reshape(b, c, s_total, lane)
        else:
            lane, s_total, s_valid = w, hc, hc
            xr = x

    # ---- tile / grid selection ----------------------------------------------
    acc_lane = max(lane, 128)                       # lane padding in VMEM
    bytes_per_row = b * c * acc_lane * itemsize
    if tile is None:
        t = _pick_tile(s_valid, s_total, min_sub, bytes_per_row,
                       acc_bytes=8 * acc_lane * 4,
                       budget=per_buffer_budget_bytes)
    else:
        t = int(tile)
        assert s_valid % t == 0 and (t % 8 == 0 or t == s_total), "bad tile"

    acc_rows = 8 if t % 8 == 0 else t
    n_steps = s_valid // t

    if n_parallel is None:
        n_parallel = _detect_num_tensorcores()
    n_par = n_parallel if (n_parallel > 1 and n_steps % n_parallel == 0) else 1
    steps_per_par = n_steps // n_par

    tile_bytes = b * c * t * acc_lane * itemsize
    vmem_limit = int(min(max(2 * tile_bytes + acc_rows * acc_lane * 4 + (4 << 20),
                             32 << 20),
                         128 << 20))

    partials = pl.pallas_call(
        _make_l_sat_kernel(t, lane, acc_rows),
        out_shape=jax.ShapeDtypeStruct((n_par, 1, 1), jnp.float32),
        grid_spec=pltpu.PrefetchScalarGridSpec(
            num_scalar_prefetch=0,
            grid=(n_par, steps_per_par),
            in_specs=[
                pl.BlockSpec((b, c, t, lane),
                             lambda p, i: (0, 0, p * steps_per_par + i, 0)),
            ],
            out_specs=pl.BlockSpec((None, 1, 1), lambda p, i: (p, 0, 0)),
            scratch_shapes=[pltpu.VMEM((acc_rows, lane), jnp.float32)],
        ),
        compiler_params=pltpu.CompilerParams(
            dimension_semantics=("parallel", "arbitrary"),
            vmem_limit_bytes=vmem_limit),
    )(xr)

    # sum of per-block means / div^2  ==  sum(sat) / (b*c*hc*wc) for equal blocks
    return (jnp.sum(partials) / jnp.float32(norm)).reshape(1)


# --------------------------------------------------------------------------- #
# Pure numpy reference mirroring the PyTorch forward (explicit block loop)
# --------------------------------------------------------------------------- #
def l_sat_ref(x_np, div):
    b, c, h, w = x_np.shape
    bH, bW = h // div, w // div
    loss = 0.0
    for i in range(div):
        for j in range(div):
            blk = x_np[:, :, i * bH:(i + 1) * bH,
                       j * bW:(j + 1) * bW].astype(np.float64)
            mean_c = blk.mean(axis=1, keepdims=True)
            loss += np.abs(blk - mean_c).mean()
    return np.array([loss / (div * div)], dtype=np.float32)


if __name__ == "__main__":
    root = jax.random.PRNGKey(0)
    k1, k2, k3 = jax.random.split(root, 3)

    # 1) Main case: div divides h and w -> lane-dense layout, one big tile.
    x1 = jax.random.uniform(k1, (2, 3, 64, 64), dtype=jnp.float32)
    out1 = jax.block_until_ready(l_sat_pallas(x1, 4))
    np.testing.assert_allclose(np.asarray(out1), l_sat_ref(np.asarray(x1), 4),
                               rtol=1e-5, atol=1e-5)

    # 2) Forced small tile + explicit 2-way split of the "parallel" axis
    #    (v7x-style megacore sharding; harmless sequential split elsewhere).
    out1b = jax.block_until_ready(l_sat_pallas(x1, 4, tile=8, n_parallel=2))
    np.testing.assert_allclose(np.asarray(out1b), l_sat_ref(np.asarray(x1), 4),
                               rtol=1e-5, atol=1e-5)

    # 3) Row-only crop (h % div != 0): no wrapper copy, grid stops at hc rows.
    x2 = jax.random.uniform(k2, (2, 3, 66, 64), dtype=jnp.float32)
    out2 = jax.block_until_ready(l_sat_pallas(x2, 4))
    np.testing.assert_allclose(np.asarray(out2), l_sat_ref(np.asarray(x2), 4),
                               rtol=1e-5, atol=1e-5)

    # 4) Awkward extents (column crop + spatial not divisible by 128): fallback
    #    row-layout path with a full-extent block.
    x3 = jax.random.uniform(k3, (1, 3, 20, 20), dtype=jnp.float32)
    out3 = jax.block_until_ready(l_sat_pallas(x3, 3))
    np.testing.assert_allclose(np.asarray(out3), l_sat_ref(np.asarray(x3), 3),
                               rtol=1e-5, atol=1e-5)

    print("KERNEL_OK")
</pallas_src>

<mosaic_0001>
module attributes {stable_mosaic.version = 11 : i64} {
  func.func @kernel(%arg0: i32, %arg1: i32, %arg2: memref<2x3x32x128xf32, #tpu.memory_space<vmem>>, %arg3: memref<1x1x1xf32, #tpu.memory_space<vmem>>, %arg4: memref<8x128xf32, #tpu.memory_space<vmem>>) attributes {dimension_semantics = [#tpu.dimension_semantics<parallel>, #tpu.dimension_semantics<arbitrary>], iteration_bounds = array<i64: 1, 1>, scalar_prefetch = 0 : i64, scratch_operands = 1 : i64, tpu.core_type = #tpu.core_type<tc>, window_params = [{transform_indices = @transform_0, window_bounds = array<i64: 2, 3, 32, 128>}, {transform_indices = @transform_1, window_bounds = array<i64: 1, 1, 1>}]} {
    %c0_i32 = arith.constant 0 : i32
    %0 = arith.cmpi eq, %arg1, %c0_i32 : i32
    %1 = arith.extui %0 : i1 to i32
    %c0_i32_0 = arith.constant 0 : i32
    %2 = arith.cmpi ne, %1, %c0_i32_0 : i32
    scf.if %2 {
      %cst_13 = arith.constant 0.000000e+00 : f32
      %20 = vector.broadcast %cst_13 : f32 to vector<8x128xf32>
      %c0_14 = arith.constant 0 : index
      %c0_15 = arith.constant 0 : index
      %21 = vector.load %arg4[%c0_14, %c0_15] : memref<8x128xf32, #tpu.memory_space<vmem>>, vector<8x128xf32>
      tpu.vector_store %arg4[%c0_14, %c0_15], %20 {strides = array<i32>} : memref<8x128xf32, #tpu.memory_space<vmem>>, vector<8x128xf32>,
    } else {
    }
    %c0 = arith.constant 0 : index
    %c0_1 = arith.constant 0 : index
    %c0_2 = arith.constant 0 : index
    %c0_3 = arith.constant 0 : index
    %3 = vector.load %arg2[%c0, %c0_1, %c0_2, %c0_3] : memref<2x3x32x128xf32, #tpu.memory_space<vmem>>, vector<2x3x32x128xf32>
    %cst = arith.constant dense<0.000000e+00> : vector<2x32x128xf32>
    %4 = vector.multi_reduction <add>, %3, %cst [1] : vector<2x3x32x128xf32> to vector<2x32x128xf32>
    %5 = vector.shape_cast %4 : vector<2x32x128xf32> to vector<2x1x32x128xf32>
    %cst_4 = arith.constant 3.000000e+00 : f32
    %6 = vector.broadcast %cst_4 : f32 to vector<2x1x32x128xf32>
    %7 = arith.divf %5, %6 : vector<2x1x32x128xf32>
    %8 = vector.broadcast %7 : vector<2x1x32x128xf32> to vector<2x3x32x128xf32>
    %9 = arith.subf %3, %8 : vector<2x3x32x128xf32>
    %10 = math.absf %9 : vector<2x3x32x128xf32>
    %cst_5 = arith.constant dense<0.000000e+00> : vector<32x128xf32>
    %11 = vector.multi_reduction <add>, %10, %cst_5 [0, 1] : vector<2x3x32x128xf32> to vector<32x128xf32>
    %12 = vector.shape_cast %11 : vector<32x128xf32> to vector<4x8x128xf32>
    %cst_6 = arith.constant dense<0.000000e+00> : vector<8x128xf32>
    %13 = vector.multi_reduction <add>, %12, %cst_6 [0] : vector<4x8x128xf32> to vector<8x128xf32>
    %c0_7 = arith.constant 0 : index
    %c0_8 = arith.constant 0 : index
    %14 = vector.load %arg4[%c0_7, %c0_8] : memref<8x128xf32, #tpu.memory_space<vmem>>, vector<8x128xf32>
    %15 = arith.addf %14, %13 : vector<8x128xf32>
    %c0_9 = arith.constant 0 : index
    %c0_10 = arith.constant 0 : index
    %16 = vector.load %arg4[%c0_9, %c0_10] : memref<8x128xf32, #tpu.memory_space<vmem>>, vector<8x128xf32>
    tpu.vector_store %arg4[%c0_9, %c0_10], %15 {strides = array<i32>} : memref<8x128xf32, #tpu.memory_space<vmem>>, vector<8x128xf32>,
    %c0_i32_11 = arith.constant 0 : i32
    %17 = arith.cmpi eq, %arg1, %c0_i32_11 : i32
    %18 = arith.extui %17 : i1 to i32
    %c0_i32_12 = arith.constant 0 : i32
    %19 = arith.cmpi ne, %18, %c0_i32_12 : i32
    scf.if %19 {
      %c0_13 = arith.constant 0 : index
      %c0_14 = arith.constant 0 : index
      %20 = vector.load %arg4[%c0_13, %c0_14] : memref<8x128xf32, #tpu.memory_space<vmem>>, vector<8x128xf32>
      %21 = vector.shape_cast %20 : vector<8x128xf32> to vector<1x8x128xf32>
      %cst_15 = arith.constant dense<0.000000e+00> : vector<1xf32>
      %22 = vector.multi_reduction <add>, %21, %cst_15 [1, 2] : vector<1x8x128xf32> to vector<1xf32>
      %23 = vector.shape_cast %22 : vector<1xf32> to vector<1x1x1xf32>
      %24 = vector.extract %23[0, 0, 0] : f32 from vector<1x1x1xf32>
      %25 = vector.broadcast %24 : f32 to vector<1x1xf32>
      %c0_16 = arith.constant 0 : index
      %c0_17 = arith.constant 0 : index
      %c0_18 = arith.constant 0 : index
      %26 = vector.load %arg3[%c0_16, %c0_17, %c0_18] : memref<1x1x1xf32, #tpu.memory_space<vmem>>, vector<1x1x1xf32>
      %27 = vector.shape_cast %26 : vector<1x1x1xf32> to vector<1x1xf32>
      %28 = vector.shape_cast %25 : vector<1x1xf32> to vector<1x1x1xf32>
      tpu.vector_store %arg3[%c0_16, %c0_17, %c0_18], %28 {strides = array<i32>} : memref<1x1x1xf32, #tpu.memory_space<vmem>>, vector<1x1x1xf32>,
    } else {
    }
    return
  }
  func.func @transform_0(%arg0: i32, %arg1: i32) -> (i32, i32, i32, i32) {
    %c1_i32 = arith.constant 1 : i32
    %0 = arith.muli %arg0, %c1_i32 : i32
    %1 = arith.addi %0, %arg1 : i32
    %c0_i32 = arith.constant 0 : i32
    %c0_i32_0 = arith.constant 0 : i32
    %c0_i32_1 = arith.constant 0 : i32
    %c0_i32_2 = arith.constant 0 : i32
    return %c0_i32, %c0_i32_0, %1, %c0_i32_1 : i32, i32, i32, i32
  }
  func.func @transform_1(%arg0: i32, %arg1: i32) -> (i32, i32, i32) {
    %c0_i32 = arith.constant 0 : i32
    %c0_i32_0 = arith.constant 0 : i32
    %c0_i32_1 = arith.constant 0 : i32
    return %arg0, %c0_i32, %c0_i32_0 : i32, i32, i32
  }
}

</mosaic_0001>

<llo_original>
// kernel: tpu_custom_call.1
$region0: #{tpu_custom_call.1}
  #allocation0 [shape = 'u32[]', space=smem, size = 0x4, offset = 0x4, fixed_abs, tag = 'smem constant byte address 0x4 - core index']
  #allocation1 [shape = 'u32[144,128]{1,0:T(1,128)}', space=vmem, size = 0x12000, scoped, tag = 'internal scratch']
  #allocation2 [shape = 'f32[8,128]{1,0:T(8,128)}', space=vmem, size = 0x1000, scoped, tag = 'scratch operand']
  %s0 = inlined_call_operand.hbm [shape: f32[2,3,32,128], index: 0, kind: input, shape index: {}]
  %s1 = inlined_call_operand.hbm [shape: f32[1,1,1], index: 1, kind: output, shape index: {}]
  %s2 = sld [smem:[#allocation0]]
  $region26: #{tpu_custom_call.1} parent=0
    _
  %s4 = ssub.s32 1, %s2
  %s5 = scalar_select 0, %s4, %s2
  $region1: #{tpu_custom_call.1} parent=0
    #allocation3 [shape = 'u8[98304]{0}', space=vmem, size = 0x18000, scoped, tag = 'input window, operand 0, single buffered']
    #allocation4 [shape = 's32[1]{0}', space=sflag, size = 0x4, scoped, tag = 'scoped memory for tpu_custom_call.1']
    #allocation5 [shape = 's32[1]{0}', space=sflag, size = 0x4, scoped, tag = 'scoped memory for tpu_custom_call.1']
    #allocation6 [shape = 'u8[512]{0}', space=vmem, size = 0x400, scoped, tag = 'output window, operand 0, single buffered']
    %6 = vsyncpa [#allocation4], 0
    %7 = vsyncpa [#allocation5], 0
    // Predicated region
    $region2: #{tpu_custom_call.1} parent=1 // pred_check
      _
    $region3: #{tpu_custom_call.1} parent=1 // pred_check_branch
      %9 = sbr.rel (0) target = $region5
    $region4: #{tpu_custom_call.1} parent=1 // pred_region
      %s10 = sadd.s32 0, 0
      %s11 = smul.u32 4, %s10
      %s13 = ssub.s32 3072, 3072
      %14 = vsyncadd [#allocation4], %s13
      %s15 = smul.addr %s11, 128
      %s16 = scalar_lea.hbm %s0, %s15
      %s17 = sshll.u32 [#allocation3], 4
      %s18 = int_to_ptr.vmem [resolvable:$true] %s17
      %23 = dma.hbm_to_vmem [thread:$0]  %s16, 3072, %s18, [#allocation4], 128, 128, 8
    $region5: #{tpu_custom_call.1} parent=1 // pred_fallthru
      _
    // Predicated region
    $region6: #{tpu_custom_call.1} parent=1 // pred_check
      _
    $region7: #{tpu_custom_call.1} parent=1 // pred_check_branch
      %25 = sbr.rel (0) target = $region9
    $region8: #{tpu_custom_call.1} parent=1 // pred_region
      %26 = dma.done [#allocation4], 3072
    $region9: #{tpu_custom_call.1} parent=1 // pred_fallthru
      _
    %s27 = sadd.s32 0, 0
    %s28 = smul.u32 4, %s27
    %p29 = scmp.eq.s32.totalorder 0, 0
    // Predicated region
    $region10: #{tpu_custom_call.1} parent=1 // pred_check
      %p30 = pneg %p29
    $region11: #{tpu_custom_call.1} parent=1 // pred_check_branch
      %32 = sbr.rel (%p30) target = $region13
    $region12: #{tpu_custom_call.1} parent=1 // pred_region
      %33 = vst [vmem:[#allocation2] sm:$0xff] 0.0
    $region13: #{tpu_custom_call.1} parent=1 // pred_fallthru
      _
    %v34 = vld [vmem:[#allocation3] sm:$0xff]
    %v35 = vld [vmem:[#allocation3 + $0x8] sm:$0xff]
    %v36 = vld [vmem:[#allocation3 + $0x10] sm:$0xff]
    %v37 = vld [vmem:[#allocation3 + $0x18] sm:$0xff]
    %v38 = vld [vmem:[#allocation3 + $0x20] sm:$0xff]
    %v39 = vld [vmem:[#allocation3 + $0x28] sm:$0xff]
    %v40 = vld [vmem:[#allocation3 + $0x30] sm:$0xff]
    %v41 = vld [vmem:[#allocation3 + $0x38] sm:$0xff]
    %v42 = vld [vmem:[#allocation3 + $0x40] sm:$0xff]
    %v43 = vld [vmem:[#allocation3 + $0x48] sm:$0xff]
    %v44 = vld [vmem:[#allocation3 + $0x50] sm:$0xff]
    %v45 = vld [vmem:[#allocation3 + $0x58] sm:$0xff]
    %v46 = vld [vmem:[#allocation3 + $0x60] sm:$0xff]
    %v47 = vld [vmem:[#allocation3 + $0x68] sm:$0xff]
    %v48 = vld [vmem:[#allocation3 + $0x70] sm:$0xff]
    %v49 = vld [vmem:[#allocation3 + $0x78] sm:$0xff]
    %v50 = vld [vmem:[#allocation3 + $0x80] sm:$0xff]
    %v51 = vld [vmem:[#allocation3 + $0x88] sm:$0xff]
    %v52 = vld [vmem:[#allocation3 + $0x90] sm:$0xff]
    %v53 = vld [vmem:[#allocation3 + $0x98] sm:$0xff]
    %v54 = vld [vmem:[#allocation3 + $0xa0] sm:$0xff]
    %v55 = vld [vmem:[#allocation3 + $0xa8] sm:$0xff]
    %v56 = vld [vmem:[#allocation3 + $0xb0] sm:$0xff]
    %v57 = vld [vmem:[#allocation3 + $0xb8] sm:$0xff]
    %v58 = vadd.f32 %v34, %v38
    %v59 = vadd.f32 %v58, %v42
    %v60 = vadd.f32 %v35, %v39
    %v61 = vadd.f32 %v60, %v43
    %v62 = vadd.f32 %v36, %v40
    %v63 = vadd.f32 %v62, %v44
    %v64 = vadd.f32 %v37, %v41
    %v65 = vadd.f32 %v64, %v45
    %v66 = vadd.f32 %v46, %v50
    %v67 = vadd.f32 %v66, %v54
    %v68 = vadd.f32 %v47, %v51
    %v69 = vadd.f32 %v68, %v55
    %v70 = vadd.f32 %v48, %v52
    %v71 = vadd.f32 %v70, %v56
    %v72 = vadd.f32 %v49, %v53
    %v73 = vadd.f32 %v72, %v57
    %v74 = vrcp.pop 3.0
    %v75 = vmul.f32 %v59, %v74
    %v76 = vmul.f32 %v61, %v74
    %v77 = vmul.f32 %v63, %v74
    %v78 = vmul.f32 %v65, %v74
    %v79 = vmul.f32 %v67, %v74
    %v80 = vmul.f32 %v69, %v74
    %v81 = vmul.f32 %v71, %v74
    %v82 = vmul.f32 %v73, %v74
    %v83 = vsub.f32 %v34, %v75
    %v84 = vsub.f32 %v35, %v76
    %v85 = vsub.f32 %v36, %v77
    %v86 = vsub.f32 %v37, %v78
    %v87 = vsub.f32 %v38, %v75
    %v88 = vsub.f32 %v39, %v76
    %v89 = vsub.f32 %v40, %v77
    %v90 = vsub.f32 %v41, %v78
    %v91 = vsub.f32 %v42, %v75
    %v92 = vsub.f32 %v43, %v76
    %v93 = vsub.f32 %v44, %v77
    %v94 = vsub.f32 %v45, %v78
    %v95 = vsub.f32 %v46, %v79
    %v96 = vsub.f32 %v47, %v80
    %v97 = vsub.f32 %v48, %v81
    %v98 = vsub.f32 %v49, %v82
    %v99 = vsub.f32 %v50, %v79
    %v100 = vsub.f32 %v51, %v80
    %v101 = vsub.f32 %v52, %v81
    %v102 = vsub.f32 %v53, %v82
    %v103 = vsub.f32 %v54, %v79
    %v104 = vsub.f32 %v55, %v80
    %v105 = vsub.f32 %v56, %v81
    %v106 = vsub.f32 %v57, %v82
    %v107 = vand.u32 2147483647, %v83
    %v108 = vand.u32 2147483647, %v84
    %v109 = vand.u32 2147483647, %v85
    %v110 = vand.u32 2147483647, %v86
    %v111 = vand.u32 2147483647, %v87
    %v112 = vand.u32 2147483647, %v88
    %v113 = vand.u32 2147483647, %v89
    %v114 = vand.u32 2147483647, %v90
    %v115 = vand.u32 2147483647, %v91
    %v116 = vand.u32 2147483647, %v92
    %v117 = vand.u32 2147483647, %v93
    %v118 = vand.u32 2147483647, %v94
    %v119 = vand.u32 2147483647, %v95
    %v120 = vand.u32 2147483647, %v96
    %v121 = vand.u32 2147483647, %v97
    %v122 = vand.u32 2147483647, %v98
    %v123 = vand.u32 2147483647, %v99
    %v124 = vand.u32 2147483647, %v100
    %v125 = vand.u32 2147483647, %v101
    %v126 = vand.u32 2147483647, %v102
    %v127 = vand.u32 2147483647, %v103
    %v128 = vand.u32 2147483647, %v104
    %v129 = vand.u32 2147483647, %v105
    %v130 = vand.u32 2147483647, %v106
    %v131 = vadd.f32 %v107, %v111
    %v132 = vadd.f32 %v131, %v115
    %v133 = vadd.f32 %v132, %v119
    %v134 = vadd.f32 %v133, %v123
    %v135 = vadd.f32 %v134, %v127
    %v136 = vadd.f32 %v108, %v112
    %v137 = vadd.f32 %v136, %v116
    %v138 = vadd.f32 %v137, %v120
    %v139 = vadd.f32 %v138, %v124
    %v140 = vadd.f32 %v139, %v128
    %v141 = vadd.f32 %v109, %v113
    %v142 = vadd.f32 %v141, %v117
    %v143 = vadd.f32 %v142, %v121
    %v144 = vadd.f32 %v143, %v125
    %v145 = vadd.f32 %v144, %v129
    %v146 = vadd.f32 %v110, %v114
    %v147 = vadd.f32 %v146, %v118
    %v148 = vadd.f32 %v147, %v122
    %v149 = vadd.f32 %v148, %v126
    %v150 = vadd.f32 %v149, %v130
    %v151 = vadd.f32 %v135, %v140
    %v152 = vadd.f32 %v151, %v145
    %v153 = vadd.f32 %v152, %v150
    %v154 = vld [vmem:[#allocation2] sm:$0xff]
    %v155 = vadd.f32 %v154, %v153
    %156 = vst [vmem:[#allocation2] sm:$0xff] %v155
    // Predicated region
    $region14: #{tpu_custom_call.1} parent=1 // pred_check
      %p157 = pneg %p29
    $region15: #{tpu_custom_call.1} parent=1 // pred_check_branch
      %159 = sbr.rel (%p157) target = $region17
    $region16: #{tpu_custom_call.1} parent=1 // pred_region
      %v160 = vld [vmem:[#allocation2] sm:$0xff]
      %161 = vadd.xlane.f32.xlu0 %v160
      %v162 = vpop.xlane.xlu0 %161
      %v163 = vrot.slane %v162, 4
      %v164 = vadd.f32 %v162, %v163
      %v165 = vrot.slane %v164, 2
      %v166 = vadd.f32 %v164, %v165
      %v167 = vrot.slane %v166, 1
      %v168 = vadd.f32 %v166, %v167
      %s169 = vtos %v168
      %v170 = vstv %s169
      %vm171 = vcmask 0
      %172 = vst.msk [vmem:[#allocation6] sm:$0x1] %vm171, %v170
    $region17: #{tpu_custom_call.1} parent=1 // pred_fallthru
      _
    // Predicated region
    $region18: #{tpu_custom_call.1} parent=1 // pred_check
      _
    $region19: #{tpu_custom_call.1} parent=1 // pred_check_branch
      %174 = sbr.rel (0) target = $region21
    $region20: #{tpu_custom_call.1} parent=1 // pred_region
      %s176 = ssub.s32 16, 16
      %177 = vsyncadd [#allocation5], %s176
      %s179 = sshll.u32 [#allocation6], 4
      %s180 = int_to_ptr.vmem [resolvable:$true] %s179
      %182 = dma.vmem_to_hbm [thread:$0]  %s180, 16, %s1, [#allocation5]
    $region21: #{tpu_custom_call.1} parent=1 // pred_fallthru
      _
    // Predicated region
    $region22: #{tpu_custom_call.1} parent=1 // pred_check
      _
    $region23: #{tpu_custom_call.1} parent=1 // pred_check_branch
      %184 = sbr.rel (0) target = $region25
    $region24: #{tpu_custom_call.1} parent=1 // pred_region
      %185 = dma.done [#allocation5], 16
    $region25: #{tpu_custom_call.1} parent=1 // pred_fallthru
      _
    %186 = vsyncpa [#allocation4], 1
    %187 = vsyncpa [#allocation5], 1

</llo_original>
